<compile_context>
chip_gen: v7x
topology: tpu7x:2x2x1
jax: 0.10.0
libtpu: 0.0.40
codegen_flags: <defaults>
</compile_context>

<pallas_src>
import functools

import jax
import jax.numpy as jnp
from jax.experimental import pallas as pl
from jax.experimental.pallas import tpu as pltpu

NEG_SLOPE = 0.01  # PyTorch nn.LeakyReLU default negative_slope


def _round_up(n, m):
    return ((n + m - 1) // m) * m


# ----------------------- fused 3-layer CNN (Pallas) -------------------------

def _fused_cnn_kernel(x_ref, w1_ref, w2_ref, w3_ref, mask_ref, o_ref, *,
                      xp_yp, yp, p_pad):
    """Fused CNNLayer: conv3x3x3 -> LeakyReLU -> conv -> LeakyReLU -> conv.

    x_ref   : (1, Ci0, P_pad) f32   padded+flattened input volume
    w*_ref  : (27, Co, Ci)    bf16  per-tap weight matrices (tap-major)
    mask_ref: (1, P_pad)      f32   1 at interior voxels, 0 at pad ring / tail
    o_ref   : (1, 2,  P_pad)  f32
    """
    x = x_ref[0]
    mask = mask_ref[...]

    def conv27(feat, w_ref, leaky, apply_mask):
        co = w_ref.shape[1]
        acc = jnp.zeros((co, feat.shape[1]), jnp.float32)
        k = 0
        for dt in (-1, 0, 1):
            for dx in (-1, 0, 1):
                for dy in (-1, 0, 1):
                    delta = dt * xp_yp + dx * yp + dy
                    if delta == 0:
                        shifted = feat
                    else:
                        # rolled[f] = feat[(f + delta) mod P_pad]; interior
                        # voxels never wrap, wrapped lanes land on masked ring.
                        shifted = pltpu.roll(feat, (-delta) % p_pad, axis=1)
                    acc += jnp.dot(w_ref[k],
                                   shifted.astype(jnp.bfloat16),
                                   preferred_element_type=jnp.float32)
                    k += 1
        if leaky:
            acc = jnp.where(acc >= 0, acc, NEG_SLOPE * acc)
        if apply_mask:
            acc = acc * mask    # re-zero pad ring so next layer sees 'same' pad
        return acc

    h1 = conv27(x, w1_ref, leaky=True, apply_mask=True)
    h2 = conv27(h1, w2_ref, leaky=True, apply_mask=True)
    h3 = conv27(h2, w3_ref, leaky=False, apply_mask=False)
    o_ref[0] = h3


def prepare_conv_weights(conv_weights):
    """(Co,Ci,3,3,3) f32 -> (27,Co,Ci) bf16, tap index k = kt*9 + kx*3 + ky."""
    prepped = []
    for w in conv_weights:
        co, ci = int(w.shape[0]), int(w.shape[1])
        wk = jnp.transpose(w, (2, 3, 4, 0, 1)).reshape(27, co, ci)
        prepped.append(wk.astype(jnp.bfloat16))
    return prepped


def fused_cnn_apply(x_real, w1, w2, w3):
    """x_real: (nb, Ci0, T, X, Y) f32 -> (nb, 2, T, X, Y) f32."""
    nb, ci0, T, X, Y = x_real.shape
    Tp, Xp, Yp = T + 2, X + 2, Y + 2
    P = Tp * Xp * Yp
    P_pad = _round_up(P, 128)                    # lane-dense slabs

    xp = jnp.pad(x_real, ((0, 0), (0, 0), (1, 1), (1, 1), (1, 1)))
    xflat = xp.reshape(nb, ci0, P)
    xflat = jnp.pad(xflat, ((0, 0), (0, 0), (0, P_pad - P)))

    interior = jnp.zeros((Tp, Xp, Yp), jnp.float32)
    interior = interior.at[1:-1, 1:-1, 1:-1].set(1.0)
    mask = jnp.pad(interior.reshape(-1), (0, P_pad - P)).reshape(1, P_pad)

    co_out = int(w3.shape[1])
    kernel = functools.partial(_fused_cnn_kernel,
                               xp_yp=Xp * Yp, yp=Yp, p_pad=P_pad)
    out = pl.pallas_call(
        kernel,
        grid=(nb,),
        in_specs=[
            pl.BlockSpec((1, ci0, P_pad), lambda b: (b, 0, 0)),
            pl.BlockSpec(tuple(w1.shape), lambda b: (0, 0, 0)),
            pl.BlockSpec(tuple(w2.shape), lambda b: (0, 0, 0)),
            pl.BlockSpec(tuple(w3.shape), lambda b: (0, 0, 0)),
            pl.BlockSpec((1, P_pad), lambda b: (0, 0)),
        ],
        out_specs=pl.BlockSpec((1, co_out, P_pad), lambda b: (b, 0, 0)),
        out_shape=jax.ShapeDtypeStruct((nb, co_out, P_pad), jnp.float32),
        compiler_params=pltpu.CompilerParams(
            dimension_semantics=("parallel",),
            # actual usage is ~2 MiB here; cap chosen to be safe on v7x's
            # 64 MiB physical VMEM while allowing bigger volumes on v5e/v6e.
            vmem_limit_bytes=48 * 1024 * 1024),
    )(xflat, w1, w2, w3, mask)

    out = out[:, :, :P].reshape(nb, co_out, Tp, Xp, Yp)
    return out[:, :, 1:-1, 1:-1, 1:-1]


def cnn_layer(x_complex, prepped_weights):
    """CNNLayer.forward: complex (nb,2,nt,nx,ny) -> complex (nb,1,nt,nx,ny)."""
    # TODO(synk): complex2real / real2complex assumed to be channel-concat of
    # real & imag parts (usual zs-ssl convention); their source was not given.
    x = jnp.concatenate([jnp.real(x_complex), jnp.imag(x_complex)],
                        axis=1).astype(jnp.float32)
    h = fused_cnn_apply(x, *prepped_weights)
    return (h[:, 0:1] + 1j * h[:, 1:2]).astype(jnp.complex64)


# ------------------------------ L+S components ------------------------------

def _lowrank_matmul_kernel(a_ref, v_ref, o_ref):
    """[lr;li] = [[UrS,-UiS],[UiS,UrS]] @ [Vr;Vi]  (one bf16 MXU matmul)."""
    o_ref[0] = jnp.dot(a_ref[0], v_ref[0], preferred_element_type=jnp.float32)


def _pick_tile(n, max_tile=2048):
    if n % 128 != 0 or n <= max_tile:
        return n
    t = (max_tile // 128) * 128
    while t >= 128:
        if n % t == 0:
            return t
        t -= 128
    return n


def lowrank(M, thresh):
    """UnrolledNet.lowrank: SVD soft-threshold; reconstruction matmul in Pallas."""
    nb, nt, N = M.shape
    # TODO(synk): CustomSVD forward == plain SVD; no Pallas SVD, so XLA SVD here.
    U, Sv, Vh = jnp.linalg.svd(M, full_matrices=False)   # U:(nb,nt,R) Vh:(nb,R,N)
    thres = jax.nn.sigmoid(thresh) * Sv[:, 0]
    St = jax.nn.relu(Sv - thres[:, None]).astype(jnp.float32)      # (nb, R)

    Ur = jnp.real(U).astype(jnp.float32) * St[:, None, :]          # U @ diag(S)
    Ui = jnp.imag(U).astype(jnp.float32) * St[:, None, :]
    A = jnp.concatenate(
        [jnp.concatenate([Ur, -Ui], axis=2),
         jnp.concatenate([Ui, Ur], axis=2)], axis=1).astype(jnp.bfloat16)
    Vs = jnp.concatenate([jnp.real(Vh), jnp.imag(Vh)],
                         axis=1).astype(jnp.bfloat16)              # (nb,2R,N)

    two_m = 2 * nt
    two_r = int(A.shape[2])
    tile_n = _pick_tile(N)
    out = pl.pallas_call(
        _lowrank_matmul_kernel,
        grid=(nb, N // tile_n),
        in_specs=[
            pl.BlockSpec((1, two_m, two_r), lambda b, j: (b, 0, 0)),
            pl.BlockSpec((1, two_r, tile_n), lambda b, j: (b, 0, j)),
        ],
        out_specs=pl.BlockSpec((1, two_m, tile_n), lambda b, j: (b, 0, j)),
        out_shape=jax.ShapeDtypeStruct((nb, two_m, N), jnp.float32),
        compiler_params=pltpu.CompilerParams(
            dimension_semantics=("parallel", "parallel")),
    )(A, Vs)
    return (out[:, :nt] + 1j * out[:, nt:]).astype(jnp.complex64)


def sparse(Mpre, L, prepped_weights, nb, nt, nx, ny):
    M_L = jnp.stack([L.reshape(nb, nt, nx, ny),
                     Mpre.reshape(nb, nt, nx, ny)], axis=1)   # (nb,2,nt,nx,ny)
    S = cnn_layer(M_L, prepped_weights)                        # (nb,1,nt,nx,ny)
    return S.reshape(nb, nt, nx * ny)


# ------------------ data-consistency (Cartesian FFT stand-in) ---------------

def _fft2c(x):
    return jnp.fft.fft2(x, norm="ortho")


def _ifft2c(x):
    return jnp.fft.ifft2(x, norm="ortho")


def op_forward(x, sens_maps, ktraj, dcomp, mask):
    # TODO(synk): the NUFFT forward operator `op` is an external ctor argument;
    # replaced here by a Cartesian masked-FFT SENSE operator (ktraj/dcomp unused).
    del ktraj, dcomp
    return mask * _fft2c(sens_maps[None, :, :, :] * x)


def op_adjoint(k, sens_maps, ktraj, dcomp, mask):
    del ktraj, dcomp
    img = _ifft2c(mask * k)
    return jnp.sum(jnp.conj(sens_maps)[None, :, :, :] * img,
                   axis=1, keepdims=True)


def dc_block(rhs, sens_maps, ktraj, dcomp, mask, mu, n_cg=6):
    # TODO(synk): dcp.dc_block source unavailable; implemented as a fixed-step
    # CG solve of (E^H E + mu I) x = rhs (standard L+S data-consistency). FFTs
    # have no Pallas equivalent, so this stays in plain JAX.
    mu_s = mu[0]

    def normal_op(v):
        return op_adjoint(op_forward(v, sens_maps, ktraj, dcomp, mask),
                          sens_maps, ktraj, dcomp, mask) + mu_s * v

    x = jnp.zeros_like(rhs)
    r = rhs
    p = rhs
    rsold = jnp.sum(jnp.conj(r) * r).real
    for _ in range(n_cg):
        Ap = normal_op(p)
        pAp = jnp.sum(jnp.conj(p) * Ap).real
        alpha = rsold / (pAp + 1e-12)
        x = x + alpha * p
        r = r - alpha * Ap
        rsnew = jnp.sum(jnp.conj(r) * r).real
        beta = rsnew / (rsold + 1e-12)
        p = r + beta * p
        rsold = rsnew
    return x


def ssdu_kspace_transform(x, sens_maps, ktraj, dcomp, loss_mask):
    # TODO(synk): dcp.SSDU_kspace_transform source unavailable; implemented as
    # the forward SENSE op masked with loss_mask.
    nt, nb, nx, ny = x.shape
    xr = x.reshape(nt * nb, 1, nx, ny)
    return op_forward(xr, sens_maps, ktraj, dcomp, loss_mask)


# -------------------------------- UnrolledNet -------------------------------

def init_params(nb_unroll_blocks, key):
    k1, k2, k3 = jax.random.split(key, 3)

    def he(k, shape):
        fan_in = shape[1] * shape[2] * shape[3] * shape[4]
        return jax.random.normal(k, shape, jnp.float32) * jnp.sqrt(2.0 / fan_in)

    conv_weights = [he(k1, (32, 4, 3, 3, 3)),
                    he(k2, (32, 32, 3, 3, 3)),
                    he(k3, (2, 32, 3, 3, 3))]
    return {
        "conv_weights": conv_weights,
        "mu_penalty": jnp.array([0.05], jnp.float32),
        "thres_coefs": [jnp.array(-2.0, jnp.float32)
                        for _ in range(nb_unroll_blocks)],
        "gammas": [jnp.array(0.5, jnp.float32)
                   for _ in range(nb_unroll_blocks)],   # present but unused
        "nb_unroll_blocks": nb_unroll_blocks,
    }


def unrolled_net_forward(params, input_x, sens_maps, ktraj, dcomp,
                         trn_mask, loss_mask, init_kspace):
    del init_kspace  # in the torch signature but unused in forward
    x = jnp.transpose(input_x, (1, 0, 2, 3))            # (nb, nt, nx, ny)
    nb, nt, nx, ny = x.shape
    input_img = x
    mu = params["mu_penalty"]                            # shape (1,)
    prepped = prepare_conv_weights(params["conv_weights"])

    L = x.reshape(nb, nt, nx * ny)
    M = L
    for i in range(params["nb_unroll_blocks"]):
        L = lowrank(M, params["thres_coefs"][i])
        S = sparse(M, L, prepped, nb, nt, nx, ny)
        rhs = input_img + (mu * (L + S)).reshape(nb, nt, nx, ny)
        rhs = rhs.reshape(nb * nt, 1, nx, ny)
        dc = dc_block(rhs, sens_maps, ktraj, dcomp, trn_mask, mu)
        M = dc.reshape(nb, nt, -1)

    x = jnp.transpose(M.reshape(nb, nt, nx, ny), (1, 0, 2, 3))
    nw_kspace_output = ssdu_kspace_transform(x, sens_maps, ktraj, dcomp,
                                             loss_mask)
    return x, nw_kspace_output, mu, params["thres_coefs"]


# ----------------------------------- main ------------------------------------

if __name__ == "__main__":
    nt, nb, nx, ny, nc = 8, 1, 16, 16, 4
    nb_unroll_blocks = 2

    key = jax.random.PRNGKey(0)
    k_in, k_sens, k_m1, k_m2 = jax.random.split(key, 4)

    ir, ii = jax.random.normal(k_in, (2, nt, nb, nx, ny), jnp.float32)
    input_x = ((ir + 1j * ii) * 0.1).astype(jnp.complex64)

    sr, si = jax.random.normal(k_sens, (2, nc, nx, ny), jnp.float32)
    sens_maps = (sr + 1j * si).astype(jnp.complex64)
    sens_maps = sens_maps / jnp.sqrt(
        jnp.sum(jnp.abs(sens_maps) ** 2, axis=0, keepdims=True))

    trn_mask = (jax.random.uniform(k_m1, (nx, ny)) < 0.5).astype(jnp.float32)
    loss_mask = (jax.random.uniform(k_m2, (nx, ny)) < 0.4).astype(jnp.float32)

    ktraj = jnp.zeros((2, nx * ny), jnp.float32)   # unused (Cartesian stand-in)
    dcomp = jnp.ones((nx * ny,), jnp.float32)      # unused (Cartesian stand-in)
    init_kspace = jnp.zeros((nt * nb, nc, nx, ny), jnp.complex64)

    params = init_params(nb_unroll_blocks, jax.random.PRNGKey(42))

    x_out, nw_kspace, mu, thres = unrolled_net_forward(
        params, input_x, sens_maps, ktraj, dcomp, trn_mask, loss_mask,
        init_kspace)

    jax.block_until_ready((x_out, nw_kspace))
    assert x_out.shape == (nt, nb, nx, ny)
    assert x_out.dtype == jnp.complex64
    assert nw_kspace.shape == (nt * nb, nc, nx, ny)
    assert bool(jnp.all(jnp.isfinite(jnp.abs(x_out))))
    assert bool(jnp.all(jnp.isfinite(jnp.abs(nw_kspace))))
    print("KERNEL_OK")
</pallas_src>

<mosaic_0001>
module attributes {stable_mosaic.version = 11 : i64} {
  func.func @_lowrank_matmul_kernel(%arg0: i32, %arg1: i32, %arg2: memref<1x16x16xbf16, #tpu.memory_space<vmem>>, %arg3: memref<1x16x256xbf16, #tpu.memory_space<vmem>>, %arg4: memref<1x16x256xf32, #tpu.memory_space<vmem>>) attributes {dimension_semantics = [#tpu.dimension_semantics<parallel>, #tpu.dimension_semantics<parallel>], iteration_bounds = array<i64: 1, 1>, scalar_prefetch = 0 : i64, scratch_operands = 0 : i64, tpu.core_type = #tpu.core_type<tc>, window_params = [{transform_indices = @transform_0, window_bounds = array<i64: 1, 16, 16>}, {transform_indices = @transform_1, window_bounds = array<i64: 1, 16, 256>}, {transform_indices = @transform_2, window_bounds = array<i64: 1, 16, 256>}]} {
    %c0 = arith.constant 0 : index
    %c0_0 = arith.constant 0 : index
    %c0_1 = arith.constant 0 : index
    %0 = vector.load %arg2[%c0, %c0_0, %c0_1] : memref<1x16x16xbf16, #tpu.memory_space<vmem>>, vector<1x16x16xbf16>
    %1 = vector.shape_cast %0 : vector<1x16x16xbf16> to vector<16x16xbf16>
    %c0_2 = arith.constant 0 : index
    %c0_3 = arith.constant 0 : index
    %c0_4 = arith.constant 0 : index
    %2 = vector.load %arg3[%c0_2, %c0_3, %c0_4] : memref<1x16x256xbf16, #tpu.memory_space<vmem>>, vector<1x16x256xbf16>
    %3 = vector.shape_cast %2 : vector<1x16x256xbf16> to vector<16x256xbf16>
    %cst = arith.constant dense<0.000000e+00> : vector<16x256xf32>
    %4 = tpu.matmul %1, %3, %cst {dimension_numbers = #tpu.dot_dimension_numbers<[1], [0], [0], [1], [0, 0, 1, 1], [], []>} : vector<16x16xbf16>, vector<16x256xbf16>, vector<16x256xf32> -> vector<16x256xf32>
    %c0_5 = arith.constant 0 : index
    %c0_6 = arith.constant 0 : index
    %c0_7 = arith.constant 0 : index
    %5 = vector.load %arg4[%c0_5, %c0_6, %c0_7] : memref<1x16x256xf32, #tpu.memory_space<vmem>>, vector<1x16x256xf32>
    %6 = vector.shape_cast %5 : vector<1x16x256xf32> to vector<16x256xf32>
    %7 = vector.shape_cast %4 : vector<16x256xf32> to vector<1x16x256xf32>
    tpu.vector_store %arg4[%c0_5, %c0_6, %c0_7], %7 {strides = array<i32>} : memref<1x16x256xf32, #tpu.memory_space<vmem>>, vector<1x16x256xf32>,
    return
  }
  func.func @transform_0(%arg0: i32, %arg1: i32) -> (i32, i32, i32) {
    %c0_i32 = arith.constant 0 : i32
    %c0_i32_0 = arith.constant 0 : i32
    %c0_i32_1 = arith.constant 0 : i32
    return %arg0, %c0_i32, %c0_i32_0 : i32, i32, i32
  }
  func.func @transform_1(%arg0: i32, %arg1: i32) -> (i32, i32, i32) {
    %c0_i32 = arith.constant 0 : i32
    %c0_i32_0 = arith.constant 0 : i32
    return %arg0, %c0_i32, %arg1 : i32, i32, i32
  }
  func.func @transform_2(%arg0: i32, %arg1: i32) -> (i32, i32, i32) {
    %c0_i32 = arith.constant 0 : i32
    %c0_i32_0 = arith.constant 0 : i32
    return %arg0, %c0_i32, %arg1 : i32, i32, i32
  }
}

</mosaic_0001>

<llo_original>
// kernel: tpu_custom_call.1
$region0: #{tpu_custom_call.1}
  #allocation0 [shape = 'u32[]', space=smem, size = 0x4, offset = 0x4, fixed_abs, tag = 'smem constant byte address 0x4 - core index']
  #allocation1 [shape = 'u32[144,128]{1,0:T(1,128)}', space=vmem, size = 0x12000, scoped, tag = 'internal scratch']
  %s0 = inlined_call_operand.hbm [shape: bf16[1,16,16], index: 0, kind: input, shape index: {}]
  %s1 = inlined_call_operand.hbm [shape: bf16[1,16,256], index: 1, kind: input, shape index: {}]
  %s2 = inlined_call_operand.hbm [shape: f32[1,16,256], index: 2, kind: output, shape index: {}]
  %s3 = sld [smem:[#allocation0]]
  $region26: #{tpu_custom_call.1} parent=0
    _
  %s5 = ssub.s32 1, %s3
  %s6 = scalar_select 0, %s5, %s3
  $region1: #{tpu_custom_call.1} parent=0
    #allocation2 [shape = 'u8[4096]{0}', space=vmem, size = 0x1000, scoped, tag = 'input window, operand 0, single buffered']
    #allocation3 [shape = 's32[1]{0}', space=sflag, size = 0x4, scoped, tag = 'scoped memory for tpu_custom_call.1']
    #allocation4 [shape = 's32[1]{0}', space=sflag, size = 0x4, scoped, tag = 'scoped memory for tpu_custom_call.1']
    #allocation5 [shape = 'u8[8192]{0}', space=vmem, size = 0x2000, scoped, tag = 'input window, operand 1, single buffered']
    #allocation6 [shape = 's32[1]{0}', space=sflag, size = 0x4, scoped, tag = 'scoped memory for tpu_custom_call.1']
    #allocation7 [shape = 'u8[16384]{0}', space=vmem, size = 0x4000, scoped, tag = 'output window, operand 0, single buffered']
    %7 = vsyncpa [#allocation3], 0
    %8 = vsyncpa [#allocation6], 0
    %9 = vsyncpa [#allocation4], 0
    // Predicated region
    $region2: #{tpu_custom_call.1} parent=1 // pred_check
      _
    $region3: #{tpu_custom_call.1} parent=1 // pred_check_branch
      %11 = sbr.rel (0) target = $region5
    $region4: #{tpu_custom_call.1} parent=1 // pred_region
      %s13 = ssub.s32 128, 128
      %14 = vsyncadd [#allocation3], %s13
      %s15 = sshll.u32 [#allocation2], 4
      %s16 = int_to_ptr.vmem [resolvable:$true] %s15
      %21 = dma.hbm_to_vmem [thread:$0]  %s0, 128, %s16, [#allocation3], 64, 64, 4
    $region5: #{tpu_custom_call.1} parent=1 // pred_fallthru
      _
    // Predicated region
    $region6: #{tpu_custom_call.1} parent=1 // pred_check
      _
    $region7: #{tpu_custom_call.1} parent=1 // pred_check_branch
      %23 = sbr.rel (0) target = $region9
    $region8: #{tpu_custom_call.1} parent=1 // pred_region
      %s25 = ssub.s32 256, 256
      %26 = vsyncadd [#allocation6], %s25
      %s27 = sshll.u32 [#allocation5], 4
      %s28 = int_to_ptr.vmem [resolvable:$true] %s27
      %33 = dma.hbm_to_vmem [thread:$0]  %s1, 256, %s28, [#allocation6], 128, 128, 8
    $region9: #{tpu_custom_call.1} parent=1 // pred_fallthru
      _
    // Predicated region
    $region10: #{tpu_custom_call.1} parent=1 // pred_check
      _
    $region11: #{tpu_custom_call.1} parent=1 // pred_check_branch
      %35 = sbr.rel (0) target = $region13
    $region12: #{tpu_custom_call.1} parent=1 // pred_region
      %36 = dma.done [#allocation3], 128
    $region13: #{tpu_custom_call.1} parent=1 // pred_fallthru
      _
    // Predicated region
    $region14: #{tpu_custom_call.1} parent=1 // pred_check
      _
    $region15: #{tpu_custom_call.1} parent=1 // pred_check_branch
      %38 = sbr.rel (0) target = $region17
    $region16: #{tpu_custom_call.1} parent=1 // pred_region
      %39 = dma.done [#allocation6], 256
    $region17: #{tpu_custom_call.1} parent=1 // pred_fallthru
      _
    %v41 = vld [vmem:[#allocation2] sm:$0xf]
    %v42 = vld [vmem:[#allocation2 + $0x4] sm:$0xf]
    %v43 = vld [vmem:[#allocation5] sm:$0xff]
    %v44 = vld [vmem:[#allocation5 + $0x8] sm:$0xff]
    %v47 = vunpack.c.l.b16 %v41
    %v48 = vunpack.c.l.b16 %v42
    %v49 = vpack.c.b16 %v48, %v47
    %v52 = vunpack.c.l.b16 %v43
    %v53 = vunpack.c.h.b16 %v43
    %v54 = vunpack.c.l.b16 %v44
    %v55 = vunpack.c.h.b16 %v44
    %v56 = vpack.c.b16 %v54, %v52
    %v57 = vpack.c.b16 %v55, %v53
    %vm60 = vcmask 130048
    %v62 = vsel %vm60, %v49, 0
    %64 = vmatprep.subr.bf16.mxu0 %v57
    %65 = vmatpush1.bf16.msra.mxu0 %v56
    %66 = vmatprep.subr.bf16.mxu0 0
    %67 = vmatpush1.bf16.msra.mxu0 0
    %68 = vmatprep.subr.bf16.mxu0 0
    %69 = vmatpush1.bf16.msra.mxu0 0
    %70 = vmatprep.subr.bf16.mxu0 0
    %71 = vmatpush1.bf16.msra.mxu0 0
    %72 = vmatprep.subr.bf16.mxu0 0
    %73 = vmatpush1.bf16.msra.mxu0 0
    %74 = vmatprep.subr.bf16.mxu0 0
    %75 = vmatpush1.bf16.msra.mxu0 0
    %76 = vmatprep.subr.bf16.mxu0 0
    %77 = vmatpush1.bf16.msra.mxu0 0
    %78 = vmatprep.subr.bf16.mxu0 0
    %79 = vmatpush1.bf16.msra.mxu0 0
    %80 = vmatprep.subr.bf16.mxu0 0
    %81 = vmatpush1.bf16.msra.mxu0 0
    %82 = vmatprep.subr.bf16.mxu0 0
    %83 = vmatpush1.bf16.msra.mxu0 0
    %84 = vmatprep.subr.bf16.mxu0 0
    %85 = vmatpush1.bf16.msra.mxu0 0
    %86 = vmatprep.subr.bf16.mxu0 0
    %87 = vmatpush1.bf16.msra.mxu0 0
    %88 = vmatprep.subr.bf16.mxu0 0
    %89 = vmatpush1.bf16.msra.mxu0 0
    %90 = vmatprep.subr.bf16.mxu0 0
    %91 = vmatpush1.bf16.msra.mxu0 0
    %92 = vmatprep.subr.bf16.mxu0 0
    %93 = vmatpush1.bf16.msra.mxu0 0
    %94 = vmatprep.subr.bf16.mxu0 0
    %95 = vmatpush1.bf16.msra.mxu0 0
    %96 = vmatprep.mubr.bf16.mxu0 0
    %97 = vmatmul.mubr.bf16.gmra.mrb[0].mxu0 %v62
    %v98 = vpop.f32.mrb[0].mxu0
    %v99 = vadd.f32 0.0, %v98
    %v100 = vpop.f32.mrb[0].mxu0
    %v101 = vadd.f32 0.0, %v100
    %v102 = vpop.f32.mrb[0].mxu0
    %v103 = vadd.f32 0.0, %v102
    %v104 = vpop.f32.mrb[0].mxu0
    %v105 = vadd.f32 0.0, %v104
    %106 = vdwg.mxu0
    %107 = vst [vmem:[#allocation7] sm:$0xff] %v99
    %108 = vst [vmem:[#allocation7 + $0x8] sm:$0xff] %v101
    %109 = vst [vmem:[#allocation7 + $0x10] sm:$0xff] %v103
    %110 = vst [vmem:[#allocation7 + $0x18] sm:$0xff] %v105
    // Predicated region
    $region18: #{tpu_custom_call.1} parent=1 // pred_check
      _
    $region19: #{tpu_custom_call.1} parent=1 // pred_check_branch
      %112 = sbr.rel (0) target = $region21
    $region20: #{tpu_custom_call.1} parent=1 // pred_region
      %s114 = ssub.s32 512, 512
      %115 = vsyncadd [#allocation4], %s114
      %s116 = sshll.u32 [#allocation7], 4
      %s117 = int_to_ptr.vmem [resolvable:$true] %s116
      %122 = dma.vmem_to_hbm [thread:$0]  %s117, 512, %s2, [#allocation4], 256, 256, 16
    $region21: #{tpu_custom_call.1} parent=1 // pred_fallthru
      _
    // Predicated region
    $region22: #{tpu_custom_call.1} parent=1 // pred_check
      _
    $region23: #{tpu_custom_call.1} parent=1 // pred_check_branch
      %124 = sbr.rel (0) target = $region25
    $region24: #{tpu_custom_call.1} parent=1 // pred_region
      %125 = dma.done [#allocation4], 512
    $region25: #{tpu_custom_call.1} parent=1 // pred_fallthru
      _
    %126 = vsyncpa [#allocation3], 1
    %127 = vsyncpa [#allocation6], 1
    %128 = vsyncpa [#allocation4], 1

</llo_original>
